<compile_context>
chip_gen: v7x
topology: tpu7x:2x2x1
jax: 0.10.0
libtpu: 0.0.40
codegen_flags: <defaults>
</compile_context>

<pallas_src>
import functools
import numpy as np
import jax
import jax.numpy as jnp
from jax.experimental import pallas as pl
from jax.experimental.pallas import tpu as pltpu


def _round_up(x, m):
    return ((x + m - 1) // m) * m


def _cond_diag_gaussian_kernel(ctx_ref, w_ref, b_ref, eps_ref,
                               z_ref, logp_ref, *, d):
    # Fused encoder matmul on the MXU: enc = [mean | log_scale]  (TN, 2D).
    enc = jnp.dot(ctx_ref[...], w_ref[...],
                  preferred_element_type=jnp.float32) + b_ref[...]
    mean = enc[:, :d]
    log_scale = enc[:, d:]

    eps = eps_ref[...]                                   # (TN, D), f32

    # Reparameterized sample, stored straight into the (TN, D) output tile —
    # no lane-padded slab, so only useful bytes go back to HBM.
    z_ref[...] = (mean + jnp.exp(log_scale) * eps).astype(z_ref.dtype)

    # log_p = -0.5 * d * log(2*pi) - sum(log_scale + 0.5 * eps^2, axis=-1)
    const = jnp.float32(-0.5 * d * np.log(2.0 * np.pi))
    logp_ref[...] = const - jnp.sum(log_scale + 0.5 * eps * eps,
                                    axis=-1, keepdims=True)


def conditional_diag_gaussian_forward(context, W, b, eps, *,
                                      tile_n=1024, use_bf16_matmul=False):
    """Pallas-backed forward pass of ConditionalDiagGaussian.

    Args:
      context: (N, C) float32 conditioning variables (N = num_samples)
      W:       (C, 2*D) float32 encoder weight
      b:       (2*D,)   float32 encoder bias
      eps:     (N, D)   float32 standard-normal noise (reparameterization)
      tile_n:  row tile; sweep {512, 1024, 2048} for large N
      use_bf16_matmul: cast context/W to bf16 for the MXU (f32 accumulate)
    Returns:
      z:     (N, D) float32 samples
      log_p: (N,)   float32 log probabilities
    """
    N, C = context.shape
    two_d = W.shape[-1]
    d = two_d // 2
    assert eps.shape == (N, d)

    # Row-tile selection: big tiles amortize per-grid-step overhead, but keep
    # >= 2 grid blocks when N allows so v7x's two TensorCores both get work
    # under dimension_semantics=("parallel",).
    n_rounded = _round_up(N, 8)
    tn = min(tile_n, n_rounded)
    if tn == n_rounded and n_rounded >= 16:
        tn = _round_up((n_rounded + 1) // 2, 8)
    n_pad = _round_up(N, tn)

    if n_pad != N:
        context = jnp.pad(context, ((0, n_pad - N), (0, 0)))
        eps = jnp.pad(eps, ((0, n_pad - N), (0, 0)))

    if use_bf16_matmul:
        # Halves context/W DMA bytes and feeds the native bf16 MXU on
        # v6e/v7x; accumulation stays f32 inside the kernel.
        context = context.astype(jnp.bfloat16)
        W = W.astype(jnp.bfloat16)

    b2 = b.reshape(1, two_d).astype(jnp.float32)
    eps = eps.astype(jnp.float32)

    kernel = functools.partial(_cond_diag_gaussian_kernel, d=d)

    bytes_accessed = (context.size * context.dtype.itemsize
                      + W.size * W.dtype.itemsize
                      + b2.size * 4
                      + eps.size * 4
                      + n_pad * d * 4        # z
                      + n_pad * 4)           # log_p
    cost = pl.CostEstimate(
        flops=2 * n_pad * C * two_d + 6 * n_pad * d,
        transcendentals=n_pad * d,
        bytes_accessed=bytes_accessed)

    z, log_p = pl.pallas_call(
        kernel,
        out_shape=(jax.ShapeDtypeStruct((n_pad, d), jnp.float32),
                   jax.ShapeDtypeStruct((n_pad, 1), jnp.float32)),
        grid_spec=pltpu.PrefetchScalarGridSpec(
            num_scalar_prefetch=0,
            grid=(n_pad // tn,),
            in_specs=[
                pl.BlockSpec((tn, C), lambda i: (i, 0)),       # context rows
                pl.BlockSpec((C, two_d), lambda i: (0, 0)),    # W resident
                pl.BlockSpec((1, two_d), lambda i: (0, 0)),    # b resident
                pl.BlockSpec((tn, d), lambda i: (i, 0)),       # eps rows
            ],
            out_specs=(
                pl.BlockSpec((tn, d), lambda i: (i, 0)),       # z
                pl.BlockSpec((tn, 1), lambda i: (i, 0)),       # log_p
            ),
        ),
        compiler_params=pltpu.CompilerParams(
            dimension_semantics=("parallel",)),
        cost_estimate=cost,
    )(context, W, b2, eps)

    return z[:N], log_p[:N, 0]


if __name__ == "__main__":
    # shape=(16,) -> D=16, context dim C=32, num_samples N=256.
    N, C, D = 256, 32, 16

    key = jax.random.PRNGKey(0)
    k_ctx, k_w, k_b, k_eps = jax.random.split(key, 4)
    context = jax.random.normal(k_ctx, (N, C), dtype=jnp.float32)
    W = jax.random.normal(k_w, (C, 2 * D), dtype=jnp.float32) * 0.1
    b = jax.random.normal(k_b, (2 * D,), dtype=jnp.float32) * 0.1
    eps = jax.random.normal(k_eps, (N, D), dtype=jnp.float32)

    z, log_p = conditional_diag_gaussian_forward(context, W, b, eps)
    z = jax.block_until_ready(z)
    log_p = jax.block_until_ready(log_p)
    assert z.shape == (N, D) and log_p.shape == (N,)

    # Pure-JAX reference with the exact same eps (module semantics).
    enc = jnp.dot(context, W, precision=jax.lax.Precision.HIGHEST) + b
    mean, log_scale = enc[:, :D], enc[:, D:]
    z_ref = mean + jnp.exp(log_scale) * eps
    log_p_ref = (-0.5 * D * np.log(2.0 * np.pi)
                 - jnp.sum(log_scale + 0.5 * eps ** 2, axis=-1))

    np.testing.assert_allclose(np.asarray(z), np.asarray(z_ref),
                               rtol=1e-4, atol=1e-4)
    np.testing.assert_allclose(np.asarray(log_p), np.asarray(log_p_ref),
                               rtol=1e-4, atol=1e-4)

    print("KERNEL_OK")
</pallas_src>

<mosaic_0001>
module attributes {stable_mosaic.version = 11 : i64} {
  func.func @_cond_diag_gaussian_kernel(%arg0: i32, %arg1: memref<128x32xf32, #tpu.memory_space<vmem>>, %arg2: memref<32x32xf32, #tpu.memory_space<vmem>>, %arg3: memref<1x32xf32, #tpu.memory_space<vmem>>, %arg4: memref<128x16xf32, #tpu.memory_space<vmem>>, %arg5: memref<128x16xf32, #tpu.memory_space<vmem>>, %arg6: memref<128x1xf32, #tpu.memory_space<vmem>>) attributes {dimension_semantics = [#tpu.dimension_semantics<parallel>], iteration_bounds = array<i64: 2>, scalar_prefetch = 0 : i64, scratch_operands = 0 : i64, tpu.core_type = #tpu.core_type<tc>, window_params = [{transform_indices = @transform_0, window_bounds = array<i64: 128, 32>}, {pipeline_mode = #tpu.pipeline_mode<synchronous>, transform_indices = @transform_1, window_bounds = array<i64: 32, 32>}, {pipeline_mode = #tpu.pipeline_mode<synchronous>, transform_indices = @transform_2, window_bounds = array<i64: 1, 32>}, {transform_indices = @transform_3, window_bounds = array<i64: 128, 16>}, {transform_indices = @transform_4, window_bounds = array<i64: 128, 16>}, {transform_indices = @transform_5, window_bounds = array<i64: 128, 1>}]} {
    %c0 = arith.constant 0 : index
    %c0_0 = arith.constant 0 : index
    %0 = vector.load %arg1[%c0, %c0_0] : memref<128x32xf32, #tpu.memory_space<vmem>>, vector<128x32xf32>
    %c0_1 = arith.constant 0 : index
    %c0_2 = arith.constant 0 : index
    %1 = vector.load %arg2[%c0_1, %c0_2] : memref<32x32xf32, #tpu.memory_space<vmem>>, vector<32x32xf32>
    %cst = arith.constant dense<0.000000e+00> : vector<128x32xf32>
    %2 = tpu.matmul %0, %1, %cst {dimension_numbers = #tpu.dot_dimension_numbers<[1], [0], [0], [1], [0, 0, 1, 1], [], []>} : vector<128x32xf32>, vector<32x32xf32>, vector<128x32xf32> -> vector<128x32xf32>
    %c0_3 = arith.constant 0 : index
    %c0_4 = arith.constant 0 : index
    %3 = vector.load %arg3[%c0_3, %c0_4] : memref<1x32xf32, #tpu.memory_space<vmem>>, vector<1x32xf32>
    %4 = vector.broadcast %3 : vector<1x32xf32> to vector<128x32xf32>
    %5 = arith.addf %2, %4 : vector<128x32xf32>
    %6 = vector.extract_strided_slice %5 {offsets = [0, 0], sizes = [128, 16], strides = [1, 1]} : vector<128x32xf32> to vector<128x16xf32>
    %7 = vector.extract_strided_slice %5 {offsets = [0, 16], sizes = [128, 16], strides = [1, 1]} : vector<128x32xf32> to vector<128x16xf32>
    %c0_5 = arith.constant 0 : index
    %c0_6 = arith.constant 0 : index
    %8 = vector.load %arg4[%c0_5, %c0_6] : memref<128x16xf32, #tpu.memory_space<vmem>>, vector<128x16xf32>
    %9 = math.exp %7 : vector<128x16xf32>
    %10 = arith.mulf %9, %8 : vector<128x16xf32>
    %11 = arith.addf %6, %10 : vector<128x16xf32>
    %c0_7 = arith.constant 0 : index
    %c0_8 = arith.constant 0 : index
    %12 = vector.load %arg5[%c0_7, %c0_8] : memref<128x16xf32, #tpu.memory_space<vmem>>, vector<128x16xf32>
    tpu.vector_store %arg5[%c0_7, %c0_8], %11 {strides = array<i32>} : memref<128x16xf32, #tpu.memory_space<vmem>>, vector<128x16xf32>,
    %cst_9 = arith.constant 5.000000e-01 : f32
    %13 = vector.broadcast %cst_9 : f32 to vector<128x16xf32>
    %14 = arith.mulf %13, %8 : vector<128x16xf32>
    %15 = arith.mulf %14, %8 : vector<128x16xf32>
    %16 = arith.addf %7, %15 : vector<128x16xf32>
    %cst_10 = arith.constant dense<0.000000e+00> : vector<128xf32>
    %17 = vector.multi_reduction <add>, %16, %cst_10 [1] : vector<128x16xf32> to vector<128xf32>
    %18 = vector.shape_cast %17 : vector<128xf32> to vector<128x1xf32>
    %cst_11 = arith.constant -14.7030163 : f32
    %19 = vector.broadcast %cst_11 : f32 to vector<128x1xf32>
    %20 = arith.subf %19, %18 : vector<128x1xf32>
    %c0_12 = arith.constant 0 : index
    %c0_13 = arith.constant 0 : index
    %21 = vector.load %arg6[%c0_12, %c0_13] : memref<128x1xf32, #tpu.memory_space<vmem>>, vector<128x1xf32>
    tpu.vector_store %arg6[%c0_12, %c0_13], %20 {strides = array<i32>} : memref<128x1xf32, #tpu.memory_space<vmem>>, vector<128x1xf32>,
    return
  }
  func.func @transform_0(%arg0: i32) -> (i32, i32) {
    %c0_i32 = arith.constant 0 : i32
    %c0_i32_0 = arith.constant 0 : i32
    return %arg0, %c0_i32 : i32, i32
  }
  func.func @transform_1(%arg0: i32) -> (i32, i32) {
    %c0_i32 = arith.constant 0 : i32
    %c0_i32_0 = arith.constant 0 : i32
    %c0_i32_1 = arith.constant 0 : i32
    return %c0_i32, %c0_i32_0 : i32, i32
  }
  func.func @transform_2(%arg0: i32) -> (i32, i32) {
    %c0_i32 = arith.constant 0 : i32
    %c0_i32_0 = arith.constant 0 : i32
    %c0_i32_1 = arith.constant 0 : i32
    return %c0_i32, %c0_i32_0 : i32, i32
  }
  func.func @transform_3(%arg0: i32) -> (i32, i32) {
    %c0_i32 = arith.constant 0 : i32
    %c0_i32_0 = arith.constant 0 : i32
    return %arg0, %c0_i32 : i32, i32
  }
  func.func @transform_4(%arg0: i32) -> (i32, i32) {
    %c0_i32 = arith.constant 0 : i32
    %c0_i32_0 = arith.constant 0 : i32
    return %arg0, %c0_i32 : i32, i32
  }
  func.func @transform_5(%arg0: i32) -> (i32, i32) {
    %c0_i32 = arith.constant 0 : i32
    %c0_i32_0 = arith.constant 0 : i32
    return %arg0, %c0_i32 : i32, i32
  }
}

</mosaic_0001>

<llo_original>
// kernel: tpu_custom_call.1
$region0: #{tpu_custom_call.1}
  #allocation0 [shape = 'u32[]', space=smem, size = 0x4, offset = 0x4, fixed_abs, tag = 'smem constant byte address 0x4 - core index']
  #allocation1 [shape = 'u32[144,128]{1,0:T(1,128)}', space=vmem, size = 0x12000, scoped, tag = 'internal scratch']
  %s0 = inlined_call_operand.vmem [shape: f32[256,32], index: 0, kind: input, shape index: {}]
  %s1 = inlined_call_operand.vmem [shape: f32[32,32], index: 1, kind: input, shape index: {}]
  %s2 = inlined_call_operand.vmem [shape: f32[1,32], index: 2, kind: input, shape index: {}]
  %s3 = inlined_call_operand.vmem [shape: f32[256,16], index: 3, kind: input, shape index: {}]
  %s4 = inlined_call_operand.vmem [shape: f32[256,16], index: 4, kind: output, shape index: {0}]
  %s5 = inlined_call_operand.vmem [shape: f32[256,1], index: 5, kind: output, shape index: {1}]
  %6 = xla_tuple %s4, %s5
  %s7 = sld [smem:[#allocation0]]
  $region57: #{tpu_custom_call.1} parent=0
    _
  %s9 = ssub.s32 1, %s7
  %s10 = scalar_select 0, %s9, %s7
  loop: start=0, step=1, limit=4
  $region2: #{tpu_custom_call.1} parent=0 // loop_pre_header
    _
  $region3: #{tpu_custom_call.1} parent=0 // loop_header
    %s12 = sphi 0, %s16
    %p13 = scmp.ge.s32.totalorder %s12, 4
    %s22 = sphi 0, %s24
    %s25 = sphi 0, %s22
    %s26 = sphi 0, %s25
    %s42 = sphi 0, %s26
    %s46 = sphi 0, %s46
    %s48 = sphi 0, %s46
    %s49 = sphi 0, %s48
    %s63 = sphi 0, %s49
    %s67 = sphi 0, %s67
    %s69 = sphi 0, %s67
    %s70 = sphi 0, %s69
    %s84 = sphi 0, %s70
    %s90 = sphi 0, %s92
    %s93 = sphi 0, %s90
    %s94 = sphi 0, %s93
    %s110 = sphi 0, %s94
    %s116 = sphi 0, %s118
    %s119 = sphi 0, %s116
    %s120 = sphi 0, %s119
    %s136 = sphi 0, %s120
    %s142 = sphi 0, %s144
    %s145 = sphi 0, %s142
    %s146 = sphi 0, %s145
    %s162 = sphi 0, %s146
  $region4: #{tpu_custom_call.1} parent=0 // loop_header_branch
    %15 = sbr.rel (%p13) target = $region8
  $region5: #{tpu_custom_call.1} parent=0 // loop_body
    %s17 = ssub.s32 %s12, 1
    %s18 = ssub.s32 %s12, 2
    %s19 = sadd.s32 %s12, 1
    %s20 = ssub.s32 %s12, %s19
    %p21 = scmp.eq.s32.totalorder %s20, 0
    %s23 = sadd.s32 %s22, 1
    %s24 = scalar_select %p21, %s22, %s23
    %p27 = pneg %p21
    %p28 = scmp.eq.s32.totalorder %s12, 1
    %p29 = por %p27, %p28
    %p30 = scmp.ne.s32.totalorder %s22, %s25
    %p31 = scmp.eq.s32.totalorder %s12, 0
    %p32 = por %p30, %p31
    %p33 = scmp.ne.s32.totalorder %s22, %s25
    %p34 = scmp.eq.s32.totalorder %s17, 1
    %p35 = por %p33, %p34
    %p36 = scmp.ne.s32.totalorder %s25, %s26
    %p37 = scmp.eq.s32.totalorder %s17, 0
    %p38 = por %p36, %p37
    %p39 = scmp.ne.s32.totalorder %s25, %s26
    %p40 = scmp.eq.s32.totalorder %s18, 1
    %p41 = por %p39, %p40
    %p43 = scmp.ne.s32.totalorder %s26, %s42
    %p44 = scmp.eq.s32.totalorder %s18, 0
    %p45 = por %p43, %p44
    %s47 = sadd.s32 %s46, 1
    %p50 = scmp.eq.s32.totalorder %s12, 1
    %p51 = scmp.ne.s32.totalorder %s46, %s48
    %p52 = scmp.eq.s32.totalorder %s12, 0
    %p53 = por %p51, %p52
    %p54 = scmp.ne.s32.totalorder %s46, %s48
    %p55 = scmp.eq.s32.totalorder %s17, 1
    %p56 = por %p54, %p55
    %p57 = scmp.ne.s32.totalorder %s48, %s49
    %p58 = scmp.eq.s32.totalorder %s17, 0
    %p59 = por %p57, %p58
    %p60 = scmp.ne.s32.totalorder %s48, %s49
    %p61 = scmp.eq.s32.totalorder %s18, 1
    %p62 = por %p60, %p61
    %p64 = scmp.ne.s32.totalorder %s49, %s63
    %p65 = scmp.eq.s32.totalorder %s18, 0
    %p66 = por %p64, %p65
    %s68 = sadd.s32 %s67, 1
    %p71 = scmp.eq.s32.totalorder %s12, 1
    %p72 = scmp.ne.s32.totalorder %s67, %s69
    %p73 = scmp.eq.s32.totalorder %s12, 0
    %p74 = por %p72, %p73
    %p75 = scmp.ne.s32.totalorder %s67, %s69
    %p76 = scmp.eq.s32.totalorder %s17, 1
    %p77 = por %p75, %p76
    %p78 = scmp.ne.s32.totalorder %s69, %s70
    %p79 = scmp.eq.s32.totalorder %s17, 0
    %p80 = por %p78, %p79
    %p81 = scmp.ne.s32.totalorder %s69, %s70
    %p82 = scmp.eq.s32.totalorder %s18, 1
    %p83 = por %p81, %p82
    %p85 = scmp.ne.s32.totalorder %s70, %s84
    %p86 = scmp.eq.s32.totalorder %s18, 0
    %p87 = por %p85, %p86
    %s88 = ssub.s32 %s12, %s19
    %p89 = scmp.eq.s32.totalorder %s88, 0
    %s91 = sadd.s32 %s90, 1
    %s92 = scalar_select %p89, %s90, %s91
    %p95 = pneg %p89
    %p96 = scmp.eq.s32.totalorder %s12, 1
    %p97 = por %p95, %p96
    %p98 = scmp.ne.s32.totalorder %s90, %s93
    %p99 = scmp.eq.s32.totalorder %s12, 0
    %p100 = por %p98, %p99
    %p101 = scmp.ne.s32.totalorder %s90, %s93
    %p102 = scmp.eq.s32.totalorder %s17, 1
    %p103 = por %p101, %p102
    %p104 = scmp.ne.s32.totalorder %s93, %s94
    %p105 = scmp.eq.s32.totalorder %s17, 0
    %p106 = por %p104, %p105
    %p107 = scmp.ne.s32.totalorder %s93, %s94
    %p108 = scmp.eq.s32.totalorder %s18, 1
    %p109 = por %p107, %p108
    %p111 = scmp.ne.s32.totalorder %s94, %s110
    %p112 = scmp.eq.s32.totalorder %s18, 0
    %p113 = por %p111, %p112
    %s114 = ssub.s32 %s12, %s19
    %p115 = scmp.eq.s32.totalorder %s114, 0
    %s117 = sadd.s32 %s116, 1
    %s118 = scalar_select %p115, %s116, %s117
    %p121 = pneg %p115
    %p122 = scmp.eq.s32.totalorder %s12, 1
    %p123 = por %p121, %p122
    %p124 = scmp.ne.s32.totalorder %s116, %s119
    %p125 = scmp.eq.s32.totalorder %s12, 0
    %p126 = por %p124, %p125
    %p127 = scmp.ne.s32.totalorder %s116, %s119
    %p128 = scmp.eq.s32.totalorder %s17, 1
    %p129 = por %p127, %p128
    %p130 = scmp.ne.s32.totalorder %s119, %s120
    %p131 = scmp.eq.s32.totalorder %s17, 0
    %p132 = por %p130, %p131
    %p133 = scmp.ne.s32.totalorder %s119, %s120
    %p134 = scmp.eq.s32.totalorder %s18, 1
    %p135 = por %p133, %p134
    %p137 = scmp.ne.s32.totalorder %s120, %s136
    %p138 = scmp.eq.s32.totalorder %s18, 0
    %p139 = por %p137, %p138
    %s140 = ssub.s32 %s12, %s19
    %p141 = scmp.eq.s32.totalorder %s140, 0
    %s143 = sadd.s32 %s142, 1
    %s144 = scalar_select %p141, %s142, %s143
    %p147 = pneg %p141
    %p148 = scmp.eq.s32.totalorder %s12, 1
    %p149 = por %p147, %p148
    %p150 = scmp.ne.s32.totalorder %s142, %s145
    %p151 = scmp.eq.s32.totalorder %s12, 0
    %p152 = por %p150, %p151
    %p153 = scmp.ne.s32.totalorder %s142, %s145
    %p154 = scmp.eq.s32.totalorder %s17, 1
    %p155 = por %p153, %p154
    %p156 = scmp.ne.s32.totalorder %s145, %s146
    %p157 = scmp.eq.s32.totalorder %s17, 0
    %p158 = por %p156, %p157
    %p159 = scmp.ne.s32.totalorder %s145, %s146
    %p160 = scmp.eq.s32.totalorder %s18, 1
    %p161 = por %p159, %p160
    %p163 = scmp.ne.s32.totalorder %s146, %s162
    %p164 = scmp.eq.s32.totalorder %s18, 0
    %p165 = por %p163, %p164
    %p166 = scmp.le.s32.totalorder 1, %s12
    %p167 = scmp.lt.s32.totalorder %s12, 3
    %p168 = pnand %p166, %p167
    %p169 = pneg %p168
    // Predicated region
    $region9: #{tpu_custom_call.1} parent=5 // pred_check
      _
    $region10: #{tpu_custom_call.1} parent=5 // pred_check_branch
      %171 = sbr.rel (%p168) target = $region12
    $region11: #{tpu_custom_call.1} parent=5 // pred_region
      %s172 = ssub.s32 %s12, 1
      // Predicated region
      $region13: #{tpu_custom_call.1} parent=11 // pred_check
        %p173 = pneg %p59
      $region14: #{tpu_custom_call.1} parent=11 // pred_check_branch
        %175 = sbr.rel (%p173) target = $region16
      $region15: #{tpu_custom_call.1} parent=11 // pred_region
        _
      $region16: #{tpu_custom_call.1} parent=11 // pred_fallthru
        _
      // Predicated region
      $region17: #{tpu_custom_call.1} parent=11 // pred_check
        %p176 = pneg %p80
      $region18: #{tpu_custom_call.1} parent=11 // pred_check_branch
        %178 = sbr.rel (%p176) target = $region20
      $region19: #{tpu_custom_call.1} parent=11 // pred_region
        _
      $region20: #{tpu_custom_call.1} parent=11 // pred_fallthru
        _
    $region12: #{tpu_custom_call.1} parent=5 // pred_fallthru
      _
    %p179 = scmp.lt.s32.totalorder %s12, 2
    // Predicated region
    $region21: #{tpu_custom_call.1} parent=5 // pred_check
      %p180 = pneg %p179
    $region22: #{tpu_custom_call.1} parent=5 // pred_check_branch
      %182 = sbr.rel (%p180) target = $region24
    $region23: #{tpu_custom_call.1} parent=5 // pred_region
      // Predicated region
      $region25: #{tpu_custom_call.1} parent=23 // pred_check
        %p183 = pneg %p32
      $region26: #{tpu_custom_call.1} parent=23 // pred_check_branch
        %185 = sbr.rel (%p183) target = $region28
      $region27: #{tpu_custom_call.1} parent=23 // pred_region
        %s186 = smul.u32 16, %s12
        %p187 = scmp.lt.s32.totalorder %s186, 31
        %s188 = scalar_select %p187, %s186, 31
        %s189 = smul.addr %s188, 8
        %s190 = scalar_lea.vmem %s0, %s189
        %s191 = smul.u32 16, %s12
      $region28: #{tpu_custom_call.1} parent=23 // pred_fallthru
        _
      // Predicated region
      $region29: #{tpu_custom_call.1} parent=23 // pred_check
        %p192 = pneg %p100
      $region30: #{tpu_custom_call.1} parent=23 // pred_check_branch
        %194 = sbr.rel (%p192) target = $region32
      $region31: #{tpu_custom_call.1} parent=23 // pred_region
        %s195 = smul.u32 16, %s12
        %p196 = scmp.lt.s32.totalorder %s195, 31
        %s197 = scalar_select %p196, %s195, 31
        %s198 = smul.addr %s197, 8
        %s199 = scalar_lea.vmem %s3, %s198
        %s200 = smul.u32 16, %s12
      $region32: #{tpu_custom_call.1} parent=23 // pred_fallthru
        _
    $region24: #{tpu_custom_call.1} parent=5 // pred_fallthru
      _
    %p201 = scmp.le.s32.totalorder 1, %s12
    %p202 = scmp.lt.s32.totalorder %s12, 3
    %p203 = pnand %p201, %p202
    %p204 = pneg %p203
    // Predicated region
    $region33: #{tpu_custom_call.1} parent=5 // pred_check
      _
    $region34: #{tpu_custom_call.1} parent=5 // pred_check_branch
      %206 = sbr.rel (%p203) target = $region36
    $region35: #{tpu_custom_call.1} parent=5 // pred_region
      %s207 = ssub.s32 %s12, 1
      %s208 = smul.u32 16, %s17
      %p209 = scmp.lt.s32.totalorder %s208, 31
      %s210 = scalar_select %p209, %s208, 31
      %s211 = smul.addr %s210, 8
      %s212 = scalar_lea.vmem %s0, %s211
      %p213 = pneg %p38
      %p214 = pneg %p35
      %p215 = pneg %p59
      %p216 = pneg %p56
      %p217 = pneg %p80
      %p218 = pneg %p77
      %s219 = smul.u32 16, %s17
      %p220 = scmp.lt.s32.totalorder %s219, 31
      %s221 = scalar_select %p220, %s219, 31
      %s222 = smul.addr %s221, 8
      %s223 = scalar_lea.vmem %s3, %s222
      %p224 = pneg %p106
      %p225 = pneg %p103
      %p226 = pneg %p132
      %p227 = pneg %p129
      %s228 = smul.u32 16, %s17
      %p229 = scmp.lt.s32.totalorder %s228, 31
      %s230 = scalar_select %p229, %s228, 31
      %s231 = smul.addr %s230, 8
      %s232 = scalar_lea.vmem %s4, %s231
      %p233 = pneg %p158
      %p234 = pneg %p155
      %s235 = smul.u32 16, %s17
      %p236 = scmp.lt.s32.totalorder %s235, 31
      %s237 = scalar_select %p236, %s235, 31
      %s238 = smul.addr %s237, 8
      %s239 = scalar_lea.vmem %s5, %s238
      %s240 = smul.u32 16, %s17
      %p241 = scmp.lt.s32.totalorder %s240, 31
      %s242 = scalar_select %p241, %s240, 31
      %s243 = smul.addr %s242, 8
      %s244 = scalar_lea.vmem %s0, %s243
      %s245 = smul.u32 16, %s17
      %s246 = smul.u32 16, %s17
      %p247 = scmp.lt.s32.totalorder %s246, 31
      %s248 = scalar_select %p247, %s246, 31
      %s249 = smul.addr %s248, 8
      %s250 = scalar_lea.vmem %s3, %s249
      %s251 = smul.u32 16, %s17
      %s252 = smul.u32 16, %s17
      %p253 = scmp.lt.s32.totalorder %s252, 31
      %s254 = scalar_select %p253, %s252, 31
      %s255 = smul.addr %s254, 8
      %s256 = scalar_lea.vmem %s4, %s255
      %s257 = smul.u32 16, %s17
      %s258 = smul.u32 16, %s17
      %p259 = scmp.lt.s32.totalorder %s258, 31
      %s260 = scalar_select %p259, %s258, 31
      %s261 = smul.addr %s260, 8
      %s262 = scalar_lea.vmem %s5, %s261
      %s263 = smul.u32 16, %s17
      %v264 = vld [vmem:[%s244] sm:$0xff]
      %v265 = vld [vmem:[%s244 + $0x8] sm:$0xff]
      %v266 = vld [vmem:[%s244 + $0x10] sm:$0xff]
      %v267 = vld [vmem:[%s244 + $0x18] sm:$0xff]
      %v268 = vld [vmem:[%s244 + $0x20] sm:$0xff]
      %v269 = vld [vmem:[%s244 + $0x28] sm:$0xff]
      %v270 = vld [vmem:[%s244 + $0x30] sm:$0xff]
      %v271 = vld [vmem:[%s244 + $0x38] sm:$0xff]
      %v272 = vld [vmem:[%s244 + $0x40] sm:$0xff]
      %v273 = vld [vmem:[%s244 + $0x48] sm:$0xff]
      %v274 = vld [vmem:[%s244 + $0x50] sm:$0xff]
      %v275 = vld [vmem:[%s244 + $0x58] sm:$0xff]
      %v276 = vld [vmem:[%s244 + $0x60] sm:$0xff]
      %v277 = vld [vmem:[%s244 + $0x68] sm:$0xff]
      %v278 = vld [vmem:[%s244 + $0x70] sm:$0xff]
      %v279 = vld [vmem:[%s244 + $0x78] sm:$0xff]
      %v280 = vld [vmem:[%s1] sm:$0xff]
      %v281 = vld [vmem:[%s1 + $0x8] sm:$0xff]
      %v282 = vld [vmem:[%s1 + $0x10] sm:$0xff]
      %v283 = vld [vmem:[%s1 + $0x18] sm:$0xff]
      %v284 = vld [vmem:[%s2] sm:$0x1]
      %v286 = vlaneseq
      %v287 = vshrl.u32 %v286, 7
      %v288 = vsub.s32 0, %v287
      %v289 = vrot.slane %v284, %v288
      %vm291 = vcmask 261120
      %v293 = vsel %vm291, %v264, 0
      %v296 = vsel %vm291, %v265, 0
      %v299 = vsel %vm291, %v266, 0
      %v302 = vsel %vm291, %v267, 0
      %v305 = vsel %vm291, %v268, 0
      %v308 = vsel %vm291, %v269, 0
      %v311 = vsel %vm291, %v270, 0
      %v314 = vsel %vm291, %v271, 0
      %v317 = vsel %vm291, %v272, 0
      %v320 = vsel %vm291, %v273, 0
      %v323 = vsel %vm291, %v274, 0
      %v326 = vsel %vm291, %v275, 0
      %v329 = vsel %vm291, %v276, 0
      %v332 = vsel %vm291, %v277, 0
      %v335 = vsel %vm291, %v278, 0
      %v338 = vsel %vm291, %v279, 0
      %340 = vmatprep.subr.mxu0 0.0
      %341 = vmatpush1.msra.mxu0 %v280
      %342 = vmatprep.subr.mxu0 0.0
      %343 = vmatpush1.msra.mxu0 %v281
      %344 = vmatprep.subr.mxu0 0.0
      %345 = vmatpush1.msra.mxu0 %v282
      %346 = vmatprep.subr.mxu0 0.0
      %347 = vmatpush1.msra.mxu0 %v283
      %348 = vmatprep.subr.mxu0 0.0
      %349 = vmatpush1.msra.mxu0 0.0
      %350 = vmatprep.subr.mxu0 0.0
      %351 = vmatpush1.msra.mxu0 0.0
      %352 = vmatprep.subr.mxu0 0.0
      %353 = vmatpush1.msra.mxu0 0.0
      %354 = vmatprep.subr.mxu0 0.0
      %355 = vmatpush1.msra.mxu0 0.0
      %356 = vmatprep.subr.mxu0 0.0
      %357 = vmatpush1.msra.mxu0 0.0
      %358 = vmatprep.subr.mxu0 0.0
      %359 = vmatpush1.msra.mxu0 0.0
      %360 = vmatprep.subr.mxu0 0.0
      %361 = vmatpush1.msra.mxu0 0.0
      %362 = vmatprep.subr.mxu0 0.0
      %363 = vmatpush1.msra.mxu0 0.0
      %364 = vmatprep.subr.mxu0 0.0
      %365 = vmatpush1.msra.mxu0 0.0
      %366 = vmatprep.subr.mxu0 0.0
      %367 = vmatpush1.msra.mxu0 0.0
      %368 = vmatprep.subr.mxu0 0.0
      %369 = vmatpush1.msra.mxu0 0.0
      %370 = vmatprep.subr.mxu0 0.0
      %371 = vmatpush1.msra.mxu0 0.0
      %372 = vmatprep.subr.mxu0 0.0
      %373 = vmatpush1.msra.mxu0 0.0
      %374 = vmatprep.subr.mxu0 0.0
      %375 = vmatpush1.msra.mxu0 0.0
      %376 = vmatprep.subr.mxu0 0.0
      %377 = vmatpush1.msra.mxu0 0.0
      %378 = vmatprep.subr.mxu0 0.0
      %379 = vmatpush1.msra.mxu0 0.0
      %380 = vmatprep.subr.mxu0 0.0
      %381 = vmatpush1.msra.mxu0 0.0
      %382 = vmatprep.subr.mxu0 0.0
      %383 = vmatpush1.msra.mxu0 0.0
      %384 = vmatprep.subr.mxu0 0.0
      %385 = vmatpush1.msra.mxu0 0.0
      %386 = vmatprep.subr.mxu0 0.0
      %387 = vmatpush1.msra.mxu0 0.0
      %388 = vmatprep.subr.mxu0 0.0
      %389 = vmatpush1.msra.mxu0 0.0
      %390 = vmatprep.subr.mxu0 0.0
      %391 = vmatpush1.msra.mxu0 0.0
      %392 = vmatprep.subr.mxu0 0.0
      %393 = vmatpush1.msra.mxu0 0.0
      %394 = vmatprep.subr.mxu0 0.0
      %395 = vmatpush1.msra.mxu0 0.0
      %396 = vmatprep.subr.mxu0 0.0
      %397 = vmatpush1.msra.mxu0 0.0
      %398 = vmatprep.subr.mxu0 0.0
      %399 = vmatpush1.msra.mxu0 0.0
      %400 = vmatprep.subr.mxu0 0.0
      %401 = vmatpush1.msra.mxu0 0.0
      %402 = vmatprep.subr.mxu0 0.0
      %403 = vmatpush1.msra.mxu0 0.0
      %404 = vmatprep.mubr.f32.mxu0 0.0
      %405 = vmatmul.mubr.f32.gmra.mrb[0].mxu0 %v293
      %v406 = vpop.f32.mrb[0].mxu0
      %v407 = vadd.f32 %v289, %v406
      %v408 = vpop.f32.mrb[0].mxu0
      %409 = vmatprep.mubr.f32.mxu0 0.0
      %410 = vmatmul.mubr.f32.gmra.mrb[0].mxu0 %v296
      %v411 = vpop.f32.mrb[0].mxu0
      %v412 = vadd.f32 %v289, %v411
      %v413 = vpop.f32.mrb[0].mxu0
      %414 = vmatprep.mubr.f32.mxu0 0.0
      %415 = vmatmul.mubr.f32.gmra.mrb[0].mxu0 %v299
      %v416 = vpop.f32.mrb[0].mxu0
      %v417 = vadd.f32 %v289, %v416
      %v418 = vpop.f32.mrb[0].mxu0
      %419 = vmatprep.mubr.f32.mxu0 0.0
      %420 = vmatmul.mubr.f32.gmra.mrb[0].mxu0 %v302
      %v421 = vpop.f32.mrb[0].mxu0
      %v422 = vadd.f32 %v289, %v421
      %v423 = vpop.f32.mrb[0].mxu0
      %424 = vmatprep.mubr.f32.mxu0 0.0
      %425 = vmatmul.mubr.f32.gmra.mrb[0].mxu0 %v305
      %v426 = vpop.f32.mrb[0].mxu0
      %v427 = vadd.f32 %v289, %v426
      %v428 = vpop.f32.mrb[0].mxu0
      %429 = vmatprep.mubr.f32.mxu0 0.0
      %430 = vmatmul.mubr.f32.gmra.mrb[0].mxu0 %v308
      %v431 = vpop.f32.mrb[0].mxu0
      %v432 = vadd.f32 %v289, %v431
      %v433 = vpop.f32.mrb[0].mxu0
      %434 = vmatprep.mubr.f32.mxu0 0.0
      %435 = vmatmul.mubr.f32.gmra.mrb[0].mxu0 %v311
      %v436 = vpop.f32.mrb[0].mxu0
      %v437 = vadd.f32 %v289, %v436
      %v438 = vpop.f32.mrb[0].mxu0
      %439 = vmatprep.mubr.f32.mxu0 0.0
      %440 = vmatmul.mubr.f32.gmra.mrb[0].mxu0 %v314
      %v441 = vpop.f32.mrb[0].mxu0
      %v442 = vadd.f32 %v289, %v441
      %v443 = vpop.f32.mrb[0].mxu0
      %444 = vmatprep.mubr.f32.mxu0 0.0
      %445 = vmatmul.mubr.f32.gmra.mrb[0].mxu0 %v317
      %v446 = vpop.f32.mrb[0].mxu0
      %v447 = vadd.f32 %v289, %v446
      %v448 = vpop.f32.mrb[0].mxu0
      %449 = vmatprep.mubr.f32.mxu0 0.0
      %450 = vmatmul.mubr.f32.gmra.mrb[0].mxu0 %v320
      %v451 = vpop.f32.mrb[0].mxu0
      %v452 = vadd.f32 %v289, %v451
      %v453 = vpop.f32.mrb[0].mxu0
      %454 = vmatprep.mubr.f32.mxu0 0.0
      %455 = vmatmul.mubr.f32.gmra.mrb[0].mxu0 %v323
      %v456 = vpop.f32.mrb[0].mxu0
      %v457 = vadd.f32 %v289, %v456
      %v458 = vpop.f32.mrb[0].mxu0
      %459 = vmatprep.mubr.f32.mxu0 0.0
      %460 = vmatmul.mubr.f32.gmra.mrb[0].mxu0 %v326
      %v461 = vpop.f32.mrb[0].mxu0
      %v462 = vadd.f32 %v289, %v461
      %v463 = vpop.f32.mrb[0].mxu0
      %464 = vmatprep.mubr.f32.mxu0 0.0
      %465 = vmatmul.mubr.f32.gmra.mrb[0].mxu0 %v329
      %v466 = vpop.f32.mrb[0].mxu0
      %v467 = vadd.f32 %v289, %v466
      %v468 = vpop.f32.mrb[0].mxu0
      %469 = vmatprep.mubr.f32.mxu0 0.0
      %470 = vmatmul.mubr.f32.gmra.mrb[0].mxu0 %v332
      %v471 = vpop.f32.mrb[0].mxu0
      %v472 = vadd.f32 %v289, %v471
      %v473 = vpop.f32.mrb[0].mxu0
      %474 = vmatprep.mubr.f32.mxu0 0.0
      %475 = vmatmul.mubr.f32.gmra.mrb[0].mxu0 %v335
      %v476 = vpop.f32.mrb[0].mxu0
      %v477 = vadd.f32 %v289, %v476
      %v478 = vpop.f32.mrb[0].mxu0
      %479 = vmatprep.mubr.f32.mxu0 0.0
      %480 = vmatmul.mubr.f32.gmra.mrb[0].mxu0 %v338
      %v481 = vpop.f32.mrb[0].mxu0
      %v482 = vadd.f32 %v289, %v481
      %v483 = vpop.f32.mrb[0].mxu0
      %484 = vdwg.mxu0
      %v485 = vld [vmem:[%s250] sm:$0xff]
      %v486 = vld [vmem:[%s250 + $0x8] sm:$0xff]
      %v487 = vld [vmem:[%s250 + $0x10] sm:$0xff]
      %v488 = vld [vmem:[%s250 + $0x18] sm:$0xff]
      %v489 = vld [vmem:[%s250 + $0x20] sm:$0xff]
      %v490 = vld [vmem:[%s250 + $0x28] sm:$0xff]
      %v491 = vld [vmem:[%s250 + $0x30] sm:$0xff]
      %v492 = vld [vmem:[%s250 + $0x38] sm:$0xff]
      %v493 = vld [vmem:[%s250 + $0x40] sm:$0xff]
      %v494 = vld [vmem:[%s250 + $0x48] sm:$0xff]
      %v495 = vld [vmem:[%s250 + $0x50] sm:$0xff]
      %v496 = vld [vmem:[%s250 + $0x58] sm:$0xff]
      %v497 = vld [vmem:[%s250 + $0x60] sm:$0xff]
      %v498 = vld [vmem:[%s250 + $0x68] sm:$0xff]
      %v499 = vld [vmem:[%s250 + $0x70] sm:$0xff]
      %v500 = vld [vmem:[%s250 + $0x78] sm:$0xff]
      %v501 = vmul.f32 %v407, 1.442695
      %v502 = vpow.pop %v501
      %v503 = vmul.f32 %v412, 1.442695
      %v504 = vpow.pop %v503
      %v505 = vmul.f32 %v417, 1.442695
      %v506 = vpow.pop %v505
      %v507 = vmul.f32 %v422, 1.442695
      %v508 = vpow.pop %v507
      %v509 = vmul.f32 %v427, 1.442695
      %v510 = vpow.pop %v509
      %v511 = vmul.f32 %v432, 1.442695
      %v512 = vpow.pop %v511
      %v513 = vmul.f32 %v437, 1.442695
      %v514 = vpow.pop %v513
      %v515 = vmul.f32 %v442, 1.442695
      %v516 = vpow.pop %v515
      %v517 = vmul.f32 %v447, 1.442695
      %v518 = vpow.pop %v517
      %v519 = vmul.f32 %v452, 1.442695
      %v520 = vpow.pop %v519
      %v521 = vmul.f32 %v457, 1.442695
      %v522 = vpow.pop %v521
      %v523 = vmul.f32 %v462, 1.442695
      %v524 = vpow.pop %v523
      %v525 = vmul.f32 %v467, 1.442695
      %v526 = vpow.pop %v525
      %v527 = vmul.f32 %v472, 1.442695
      %v528 = vpow.pop %v527
      %v529 = vmul.f32 %v477, 1.442695
      %v530 = vpow.pop %v529
      %v531 = vmul.f32 %v482, 1.442695
      %v532 = vpow.pop %v531
      %549 = vrot.lane.b32.xlu0 %v485, 16
      %v550 = vpop.permute.xlu0 %549
      %551 = vrot.lane.b32.xlu0 %v486, 16
      %v552 = vpop.permute.xlu0 %551
      %553 = vrot.lane.b32.xlu0 %v487, 16
      %v554 = vpop.permute.xlu0 %553
      %555 = vrot.lane.b32.xlu0 %v488, 16
      %v556 = vpop.permute.xlu0 %555
      %557 = vrot.lane.b32.xlu0 %v489, 16
      %v558 = vpop.permute.xlu0 %557
      %559 = vrot.lane.b32.xlu0 %v490, 16
      %v560 = vpop.permute.xlu0 %559
      %561 = vrot.lane.b32.xlu0 %v491, 16
      %v562 = vpop.permute.xlu0 %561
      %563 = vrot.lane.b32.xlu0 %v492, 16
      %v564 = vpop.permute.xlu0 %563
      %565 = vrot.lane.b32.xlu0 %v493, 16
      %v566 = vpop.permute.xlu0 %565
      %567 = vrot.lane.b32.xlu0 %v494, 16
      %v568 = vpop.permute.xlu0 %567
      %569 = vrot.lane.b32.xlu0 %v495, 16
      %v570 = vpop.permute.xlu0 %569
      %571 = vrot.lane.b32.xlu0 %v496, 16
      %v572 = vpop.permute.xlu0 %571
      %573 = vrot.lane.b32.xlu0 %v497, 16
      %v574 = vpop.permute.xlu0 %573
      %575 = vrot.lane.b32.xlu0 %v498, 16
      %v576 = vpop.permute.xlu0 %575
      %577 = vrot.lane.b32.xlu0 %v499, 16
      %v578 = vpop.permute.xlu0 %577
      %579 = vrot.lane.b32.xlu0 %v500, 16
      %v580 = vpop.permute.xlu0 %579
      %v597 = vmul.f32 %v502, %v550
      %v598 = vmul.f32 %v504, %v552
      %v599 = vmul.f32 %v506, %v554
      %v600 = vmul.f32 %v508, %v556
      %v601 = vmul.f32 %v510, %v558
      %v602 = vmul.f32 %v512, %v560
      %v603 = vmul.f32 %v514, %v562
      %v604 = vmul.f32 %v516, %v564
      %v605 = vmul.f32 %v518, %v566
      %v606 = vmul.f32 %v520, %v568
      %v607 = vmul.f32 %v522, %v570
      %v608 = vmul.f32 %v524, %v572
      %v609 = vmul.f32 %v526, %v574
      %v610 = vmul.f32 %v528, %v576
      %v611 = vmul.f32 %v530, %v578
      %v612 = vmul.f32 %v532, %v580
      %629 = vrot.lane.b32.xlu0 %v597, 112
      %v630 = vpop.permute.xlu0 %629
      %631 = vrot.lane.b32.xlu0 %v598, 112
      %v632 = vpop.permute.xlu0 %631
      %633 = vrot.lane.b32.xlu0 %v599, 112
      %v634 = vpop.permute.xlu0 %633
      %635 = vrot.lane.b32.xlu0 %v600, 112
      %v636 = vpop.permute.xlu0 %635
      %637 = vrot.lane.b32.xlu0 %v601, 112
      %v638 = vpop.permute.xlu0 %637
      %639 = vrot.lane.b32.xlu0 %v602, 112
      %v640 = vpop.permute.xlu0 %639
      %641 = vrot.lane.b32.xlu0 %v603, 112
      %v642 = vpop.permute.xlu0 %641
      %643 = vrot.lane.b32.xlu0 %v604, 112
      %v644 = vpop.permute.xlu0 %643
      %645 = vrot.lane.b32.xlu0 %v605, 112
      %v646 = vpop.permute.xlu0 %645
      %647 = vrot.lane.b32.xlu0 %v606, 112
      %v648 = vpop.permute.xlu0 %647
      %649 = vrot.lane.b32.xlu0 %v607, 112
      %v650 = vpop.permute.xlu0 %649
      %651 = vrot.lane.b32.xlu0 %v608, 112
      %v652 = vpop.permute.xlu0 %651
      %653 = vrot.lane.b32.xlu0 %v609, 112
      %v654 = vpop.permute.xlu0 %653
      %655 = vrot.lane.b32.xlu0 %v610, 112
      %v656 = vpop.permute.xlu0 %655
      %657 = vrot.lane.b32.xlu0 %v611, 112
      %v658 = vpop.permute.xlu0 %657
      %659 = vrot.lane.b32.xlu0 %v612, 112
      %v660 = vpop.permute.xlu0 %659
      %v677 = vadd.f32 %v407, %v630
      %v678 = vadd.f32 %v412, %v632
      %v679 = vadd.f32 %v417, %v634
      %v680 = vadd.f32 %v422, %v636
      %v681 = vadd.f32 %v427, %v638
      %v682 = vadd.f32 %v432, %v640
      %v683 = vadd.f32 %v437, %v642
      %v684 = vadd.f32 %v442, %v644
      %v685 = vadd.f32 %v447, %v646
      %v686 = vadd.f32 %v452, %v648
      %v687 = vadd.f32 %v457, %v650
      %v688 = vadd.f32 %v462, %v652
      %v689 = vadd.f32 %v467, %v654
      %v690 = vadd.f32 %v472, %v656
      %v691 = vadd.f32 %v477, %v658
      %v692 = vadd.f32 %v482, %v660
      %vm693 = vcmask 130048
      %694 = vst.msk [vmem:[%s256] sm:$0xff] %vm693, %v677
      %695 = vst.msk [vmem:[%s256 + $0x8] sm:$0xff] %vm693, %v678
      %696 = vst.msk [vmem:[%s256 + $0x10] sm:$0xff] %vm693, %v679
      %697 = vst.msk [vmem:[%s256 + $0x18] sm:$0xff] %vm693, %v680
      %698 = vst.msk [vmem:[%s256 + $0x20] sm:$0xff] %vm693, %v681
      %699 = vst.msk [vmem:[%s256 + $0x28] sm:$0xff] %vm693, %v682
      %700 = vst.msk [vmem:[%s256 + $0x30] sm:$0xff] %vm693, %v683
      %701 = vst.msk [vmem:[%s256 + $0x38] sm:$0xff] %vm693, %v684
      %702 = vst.msk [vmem:[%s256 + $0x40] sm:$0xff] %vm693, %v685
      %703 = vst.msk [vmem:[%s256 + $0x48] sm:$0xff] %vm693, %v686
      %704 = vst.msk [vmem:[%s256 + $0x50] sm:$0xff] %vm693, %v687
      %705 = vst.msk [vmem:[%s256 + $0x58] sm:$0xff] %vm693, %v688
      %706 = vst.msk [vmem:[%s256 + $0x60] sm:$0xff] %vm693, %v689
      %707 = vst.msk [vmem:[%s256 + $0x68] sm:$0xff] %vm693, %v690
      %708 = vst.msk [vmem:[%s256 + $0x70] sm:$0xff] %vm693, %v691
      %709 = vst.msk [vmem:[%s256 + $0x78] sm:$0xff] %vm693, %v692
      %v710 = vmul.f32 %v485, 0.5
      %v711 = vmul.f32 %v486, 0.5
      %v712 = vmul.f32 %v487, 0.5
      %v713 = vmul.f32 %v488, 0.5
      %v714 = vmul.f32 %v489, 0.5
      %v715 = vmul.f32 %v490, 0.5
      %v716 = vmul.f32 %v491, 0.5
      %v717 = vmul.f32 %v492, 0.5
      %v718 = vmul.f32 %v493, 0.5
      %v719 = vmul.f32 %v494, 0.5
      %v720 = vmul.f32 %v495, 0.5
      %v721 = vmul.f32 %v496, 0.5
      %v722 = vmul.f32 %v497, 0.5
      %v723 = vmul.f32 %v498, 0.5
      %v724 = vmul.f32 %v499, 0.5
      %v725 = vmul.f32 %v500, 0.5
      %v726 = vmul.f32 %v710, %v485
      %v727 = vmul.f32 %v711, %v486
      %v728 = vmul.f32 %v712, %v487
      %v729 = vmul.f32 %v713, %v488
      %v730 = vmul.f32 %v714, %v489
      %v731 = vmul.f32 %v715, %v490
      %v732 = vmul.f32 %v716, %v491
      %v733 = vmul.f32 %v717, %v492
      %v734 = vmul.f32 %v718, %v493
      %v735 = vmul.f32 %v719, %v494
      %v736 = vmul.f32 %v720, %v495
      %v737 = vmul.f32 %v721, %v496
      %v738 = vmul.f32 %v722, %v497
      %v739 = vmul.f32 %v723, %v498
      %v740 = vmul.f32 %v724, %v499
      %v741 = vmul.f32 %v725, %v500
      %758 = vrot.lane.b32.xlu0 %v726, 16
      %v759 = vpop.permute.xlu0 %758
      %760 = vrot.lane.b32.xlu0 %v727, 16
      %v761 = vpop.permute.xlu0 %760
      %762 = vrot.lane.b32.xlu0 %v728, 16
      %v763 = vpop.permute.xlu0 %762
      %764 = vrot.lane.b32.xlu0 %v729, 16
      %v765 = vpop.permute.xlu0 %764
      %766 = vrot.lane.b32.xlu0 %v730, 16
      %v767 = vpop.permute.xlu0 %766
      %768 = vrot.lane.b32.xlu0 %v731, 16
      %v769 = vpop.permute.xlu0 %768
      %770 = vrot.lane.b32.xlu0 %v732, 16
      %v771 = vpop.permute.xlu0 %770
      %772 = vrot.lane.b32.xlu0 %v733, 16
      %v773 = vpop.permute.xlu0 %772
      %774 = vrot.lane.b32.xlu0 %v734, 16
      %v775 = vpop.permute.xlu0 %774
      %776 = vrot.lane.b32.xlu0 %v735, 16
      %v777 = vpop.permute.xlu0 %776
      %778 = vrot.lane.b32.xlu0 %v736, 16
      %v779 = vpop.permute.xlu0 %778
      %780 = vrot.lane.b32.xlu0 %v737, 16
      %v781 = vpop.permute.xlu0 %780
      %782 = vrot.lane.b32.xlu0 %v738, 16
      %v783 = vpop.permute.xlu0 %782
      %784 = vrot.lane.b32.xlu0 %v739, 16
      %v785 = vpop.permute.xlu0 %784
      %786 = vrot.lane.b32.xlu0 %v740, 16
      %v787 = vpop.permute.xlu0 %786
      %788 = vrot.lane.b32.xlu0 %v741, 16
      %v789 = vpop.permute.xlu0 %788
      %v806 = vadd.f32 %v407, %v759
      %v807 = vadd.f32 %v412, %v761
      %v808 = vadd.f32 %v417, %v763
      %v809 = vadd.f32 %v422, %v765
      %v810 = vadd.f32 %v427, %v767
      %v811 = vadd.f32 %v432, %v769
      %v812 = vadd.f32 %v437, %v771
      %v813 = vadd.f32 %v442, %v773
      %v814 = vadd.f32 %v447, %v775
      %v815 = vadd.f32 %v452, %v777
      %v816 = vadd.f32 %v457, %v779
      %v817 = vadd.f32 %v462, %v781
      %v818 = vadd.f32 %v467, %v783
      %v819 = vadd.f32 %v472, %v785
      %v820 = vadd.f32 %v477, %v787
      %v821 = vadd.f32 %v482, %v789
      %838 = vrot.lane.b32.xlu0 %v806, 112
      %v839 = vpop.permute.xlu0 %838
      %840 = vrot.lane.b32.xlu0 %v807, 112
      %v841 = vpop.permute.xlu0 %840
      %842 = vrot.lane.b32.xlu0 %v808, 112
      %v843 = vpop.permute.xlu0 %842
      %844 = vrot.lane.b32.xlu0 %v809, 112
      %v845 = vpop.permute.xlu0 %844
      %846 = vrot.lane.b32.xlu0 %v810, 112
      %v847 = vpop.permute.xlu0 %846
      %848 = vrot.lane.b32.xlu0 %v811, 112
      %v849 = vpop.permute.xlu0 %848
      %850 = vrot.lane.b32.xlu0 %v812, 112
      %v851 = vpop.permute.xlu0 %850
      %852 = vrot.lane.b32.xlu0 %v813, 112
      %v853 = vpop.permute.xlu0 %852
      %854 = vrot.lane.b32.xlu0 %v814, 112
      %v855 = vpop.permute.xlu0 %854
      %856 = vrot.lane.b32.xlu0 %v815, 112
      %v857 = vpop.permute.xlu0 %856
      %858 = vrot.lane.b32.xlu0 %v816, 112
      %v859 = vpop.permute.xlu0 %858
      %860 = vrot.lane.b32.xlu0 %v817, 112
      %v861 = vpop.permute.xlu0 %860
      %862 = vrot.lane.b32.xlu0 %v818, 112
      %v863 = vpop.permute.xlu0 %862
      %864 = vrot.lane.b32.xlu0 %v819, 112
      %v865 = vpop.permute.xlu0 %864
      %866 = vrot.lane.b32.xlu0 %v820, 112
      %v867 = vpop.permute.xlu0 %866
      %868 = vrot.lane.b32.xlu0 %v821, 112
      %v869 = vpop.permute.xlu0 %868
      %v886 = vsel %vm693, %v839, 0.0
      %887 = vadd.xlane.f32.xlu0 %v886
      %v888 = vpop.xlane.xlu0 %887
      %v889 = vsel %vm693, %v841, 0.0
      %890 = vadd.xlane.f32.xlu0 %v889
      %v891 = vpop.xlane.xlu0 %890
      %v892 = vsel %vm693, %v843, 0.0
      %893 = vadd.xlane.f32.xlu0 %v892
      %v894 = vpop.xlane.xlu0 %893
      %v895 = vsel %vm693, %v845, 0.0
      %896 = vadd.xlane.f32.xlu0 %v895
      %v897 = vpop.xlane.xlu0 %896
      %v898 = vsel %vm693, %v847, 0.0
      %899 = vadd.xlane.f32.xlu0 %v898
      %v900 = vpop.xlane.xlu0 %899
      %v901 = vsel %vm693, %v849, 0.0
      %902 = vadd.xlane.f32.xlu0 %v901
      %v903 = vpop.xlane.xlu0 %902
      %v904 = vsel %vm693, %v851, 0.0
      %905 = vadd.xlane.f32.xlu0 %v904
      %v906 = vpop.xlane.xlu0 %905
      %v907 = vsel %vm693, %v853, 0.0
      %908 = vadd.xlane.f32.xlu0 %v907
      %v909 = vpop.xlane.xlu0 %908
      %v910 = vsel %vm693, %v855, 0.0
      %911 = vadd.xlane.f32.xlu0 %v910
      %v912 = vpop.xlane.xlu0 %911
      %v913 = vsel %vm693, %v857, 0.0
      %914 = vadd.xlane.f32.xlu0 %v913
      %v915 = vpop.xlane.xlu0 %914
      %v916 = vsel %vm693, %v859, 0.0
      %917 = vadd.xlane.f32.xlu0 %v916
      %v918 = vpop.xlane.xlu0 %917
      %v919 = vsel %vm693, %v861, 0.0
      %920 = vadd.xlane.f32.xlu0 %v919
      %v921 = vpop.xlane.xlu0 %920
      %v922 = vsel %vm693, %v863, 0.0
      %923 = vadd.xlane.f32.xlu0 %v922
      %v924 = vpop.xlane.xlu0 %923
      %v925 = vsel %vm693, %v865, 0.0
      %926 = vadd.xlane.f32.xlu0 %v925
      %v927 = vpop.xlane.xlu0 %926
      %v928 = vsel %vm693, %v867, 0.0
      %929 = vadd.xlane.f32.xlu0 %v928
      %v930 = vpop.xlane.xlu0 %929
      %v931 = vsel %vm693, %v869, 0.0
      %932 = vadd.xlane.f32.xlu0 %v931
      %v933 = vpop.xlane.xlu0 %932
      %v934 = vsub.f32 -14.703016, %v888
      %v935 = vsub.f32 -14.703016, %v891
      %v936 = vsub.f32 -14.703016, %v894
      %v937 = vsub.f32 -14.703016, %v897
      %v938 = vsub.f32 -14.703016, %v900
      %v939 = vsub.f32 -14.703016, %v903
      %v940 = vsub.f32 -14.703016, %v906
      %v941 = vsub.f32 -14.703016, %v909
      %v942 = vsub.f32 -14.703016, %v912
      %v943 = vsub.f32 -14.703016, %v915
      %v944 = vsub.f32 -14.703016, %v918
      %v945 = vsub.f32 -14.703016, %v921
      %v946 = vsub.f32 -14.703016, %v924
      %v947 = vsub.f32 -14.703016, %v927
      %v948 = vsub.f32 -14.703016, %v930
      %v949 = vsub.f32 -14.703016, %v933
      %vm950 = vcmask 7168
      %951 = vst.msk [vmem:[%s262] sm:$0xff] %vm950, %v934
      %952 = vst.msk [vmem:[%s262 + $0x8] sm:$0xff] %vm950, %v935
      %953 = vst.msk [vmem:[%s262 + $0x10] sm:$0xff] %vm950, %v936
      %954 = vst.msk [vmem:[%s262 + $0x18] sm:$0xff] %vm950, %v937
      %955 = vst.msk [vmem:[%s262 + $0x20] sm:$0xff] %vm950, %v938
      %956 = vst.msk [vmem:[%s262 + $0x28] sm:$0xff] %vm950, %v939
      %957 = vst.msk [vmem:[%s262 + $0x30] sm:$0xff] %vm950, %v940
      %958 = vst.msk [vmem:[%s262 + $0x38] sm:$0xff] %vm950, %v941
      %959 = vst.msk [vmem:[%s262 + $0x40] sm:$0xff] %vm950, %v942
      %960 = vst.msk [vmem:[%s262 + $0x48] sm:$0xff] %vm950, %v943
      %961 = vst.msk [vmem:[%s262 + $0x50] sm:$0xff] %vm950, %v944
      %962 = vst.msk [vmem:[%s262 + $0x58] sm:$0xff] %vm950, %v945
      %963 = vst.msk [vmem:[%s262 + $0x60] sm:$0xff] %vm950, %v946
      %964 = vst.msk [vmem:[%s262 + $0x68] sm:$0xff] %vm950, %v947
      %965 = vst.msk [vmem:[%s262 + $0x70] sm:$0xff] %vm950, %v948
      %966 = vst.msk [vmem:[%s262 + $0x78] sm:$0xff] %vm950, %v949
      %s967 = smul.u32 16, %s17
      %p968 = scmp.lt.s32.totalorder %s967, 31
      %s969 = scalar_select %p968, %s967, 31
      %s970 = smul.addr %s969, 8
      %s971 = scalar_lea.vmem %s4, %s970
      %s972 = smul.u32 16, %s17
      %p973 = scmp.lt.s32.totalorder %s972, 31
      %s974 = scalar_select %p973, %s972, 31
      %s975 = smul.addr %s974, 8
      %s976 = scalar_lea.vmem %s5, %s975
      // Predicated region
      $region37: #{tpu_custom_call.1} parent=35 // pred_check
        %p977 = pneg %p129
      $region38: #{tpu_custom_call.1} parent=35 // pred_check_branch
        %979 = sbr.rel (%p977) target = $region40
      $region39: #{tpu_custom_call.1} parent=35 // pred_region
        %s980 = smul.u32 16, %s17
      $region40: #{tpu_custom_call.1} parent=35 // pred_fallthru
        _
      // Predicated region
      $region41: #{tpu_custom_call.1} parent=35 // pred_check
        %p981 = pneg %p155
      $region42: #{tpu_custom_call.1} parent=35 // pred_check_branch
        %983 = sbr.rel (%p981) target = $region44
      $region43: #{tpu_custom_call.1} parent=35 // pred_region
        %s984 = smul.u32 16, %s17
      $region44: #{tpu_custom_call.1} parent=35 // pred_fallthru
        _
    $region36: #{tpu_custom_call.1} parent=5 // pred_fallthru
      _
    %p985 = scmp.le.s32.totalorder 2, %s12
    // Predicated region
    $region45: #{tpu_custom_call.1} parent=5 // pred_check
      %p986 = pneg %p985
    $region46: #{tpu_custom_call.1} parent=5 // pred_check_branch
      %988 = sbr.rel (%p986) target = $region48
    $region47: #{tpu_custom_call.1} parent=5 // pred_region
      %s989 = ssub.s32 %s12, 2
      // Predicated region
      $region49: #{tpu_custom_call.1} parent=47 // pred_check
        %p990 = pneg %p135
      $region50: #{tpu_custom_call.1} parent=47 // pred_check_branch
        %992 = sbr.rel (%p990) target = $region52
      $region51: #{tpu_custom_call.1} parent=47 // pred_region
        %s993 = smul.u32 16, %s18
        %p994 = scmp.lt.s32.totalorder %s993, 31
        %s995 = scalar_select %p994, %s993, 31
        %s996 = smul.addr %s995, 8
        %s997 = scalar_lea.vmem %s4, %s996
      $region52: #{tpu_custom_call.1} parent=47 // pred_fallthru
        _
      // Predicated region
      $region53: #{tpu_custom_call.1} parent=47 // pred_check
        %p998 = pneg %p161
      $region54: #{tpu_custom_call.1} parent=47 // pred_check_branch
        %1000 = sbr.rel (%p998) target = $region56
      $region55: #{tpu_custom_call.1} parent=47 // pred_region
        %s1001 = smul.u32 16, %s18
        %p1002 = scmp.lt.s32.totalorder %s1001, 31
        %s1003 = scalar_select %p1002, %s1001, 31
        %s1004 = smul.addr %s1003, 8
        %s1005 = scalar_lea.vmem %s5, %s1004
      $region56: #{tpu_custom_call.1} parent=47 // pred_fallthru
        _
    $region48: #{tpu_custom_call.1} parent=5 // pred_fallthru
      _
  $region6: #{tpu_custom_call.1} parent=0 // loop_footer
    %s16 = sadd.s32 1, %s12
  $region7: #{tpu_custom_call.1} parent=0 // loop_footer_branch
    %11 = sbr.rel target = $region3
  $region8: #{tpu_custom_call.1} parent=0 // loop_exit
    _

</llo_original>
